<compile_context>
chip_gen: v6e
topology: v6e:2x2x1
jax: 0.10.0
libtpu: 0.0.40
codegen_flags: <defaults>
</compile_context>

<pallas_src>
from functools import partial

import numpy as np
import jax
import jax.numpy as jnp
from jax import lax
from jax.experimental import pallas as pl
from jax.experimental.pallas import tpu as pltpu


# ----------------------------------------------------------------------------
# Pallas kernels (hot path)
# ----------------------------------------------------------------------------
def _mm_bias_kernel(a_ref, b_ref, c_ref, o_ref, *, apply_relu):
    # out = relu( A @ B + bias ), A/B in bf16, accumulate in f32 on the MXU.
    acc = jnp.dot(a_ref[...], b_ref[...], preferred_element_type=jnp.float32)
    y = acc + c_ref[...]
    if apply_relu:
        y = jnp.maximum(y, 0.0)
    o_ref[...] = y


def _pick_tm(m):
    if m % 256 == 0:
        return 256
    if m % 128 == 0:
        return 128
    if m <= 256:
        return m          # single full-extent block (always legal)
    return 128            # ragged last block handled by Pallas (cdiv grid)


def matmul_bias(a, b, bias, apply_relu):
    """a: (M, K) bf16, b: (K, N) bf16, bias: (N,) f32 -> (M, N) f32."""
    M, K = a.shape
    _, Nc = b.shape
    TM = _pick_tm(M)
    TN = 128 if (Nc >= 256 and Nc % 128 == 0) else Nc
    grid = (pl.cdiv(M, TM), Nc // TN)
    return pl.pallas_call(
        partial(_mm_bias_kernel, apply_relu=apply_relu),
        out_shape=jax.ShapeDtypeStruct((M, Nc), jnp.float32),
        grid=grid,
        in_specs=[
            pl.BlockSpec((TM, K), lambda i, j: (i, 0)),
            pl.BlockSpec((K, TN), lambda i, j: (0, j)),
            pl.BlockSpec((1, TN), lambda i, j: (0, j)),
        ],
        out_specs=pl.BlockSpec((TM, TN), lambda i, j: (i, j)),
        compiler_params=pltpu.CompilerParams(
            dimension_semantics=("parallel", "parallel"),
            vmem_limit_bytes=32 * 1024 * 1024,
        ),
    )(a, b, bias.reshape(1, Nc).astype(jnp.float32))


def _add_act_kernel(a_ref, b_ref, o_ref, *, apply_relu):
    y = a_ref[...] + b_ref[...]
    if apply_relu:
        y = jnp.maximum(y, 0.0)
    o_ref[...] = y


def add_act(a, b, apply_relu):
    """Elementwise a + b (+ optional ReLU); lane-dense tiled view."""
    shape = a.shape
    total = int(np.prod(shape))
    lane = None
    for cand in (1024, 512, 256, 128):
        if total % cand == 0:
            lane = cand
            break
    if lane is None:
        lane = shape[-1]  # fallback (not hit for the shapes used here)
    a2 = a.reshape(-1, lane)
    b2 = b.reshape(-1, lane)
    rows = a2.shape[0]
    tr = rows if rows <= 512 else 512
    out = pl.pallas_call(
        partial(_add_act_kernel, apply_relu=apply_relu),
        out_shape=jax.ShapeDtypeStruct((rows, lane), jnp.float32),
        grid=(pl.cdiv(rows, tr),),
        in_specs=[
            pl.BlockSpec((tr, lane), lambda i: (i, 0)),
            pl.BlockSpec((tr, lane), lambda i: (i, 0)),
        ],
        out_specs=pl.BlockSpec((tr, lane), lambda i: (i, 0)),
        compiler_params=pltpu.CompilerParams(dimension_semantics=("parallel",)),
    )(a2, b2)
    return out.reshape(shape)


# ----------------------------------------------------------------------------
# Conv / residual / hourglass building blocks (Pallas compute + JAX glue)
# ----------------------------------------------------------------------------
def conv2d_core(x, w, bias, stride=1, relu=True):
    """x: (N, H, W, Cin) NHWC; w: (KH, KW, Cin, Cout) bf16; bias: (Cout,) f32."""
    KH, KW, Cin, Cout = w.shape
    N, H, W, _ = x.shape
    pad = (KH - 1) // 2
    xb = x.astype(jnp.bfloat16)
    xp = jnp.pad(xb, ((0, 0), (pad, pad), (pad, pad), (0, 0)))
    OH = (H + 2 * pad - KH) // stride + 1
    OW = (W + 2 * pad - KW) // stride + 1
    # im2col (glue, bf16): gather shifted slices, concat on channel axis.
    cols = []
    for kh in range(KH):
        for kw in range(KW):
            cols.append(
                xp[:, kh:kh + stride * (OH - 1) + 1:stride,
                      kw:kw + stride * (OW - 1) + 1:stride, :]
            )
    patches = jnp.concatenate(cols, axis=-1)             # (N, OH, OW, KH*KW*Cin)
    a = patches.reshape(N * OH * OW, KH * KW * Cin)
    bmat = w.reshape(KH * KW * Cin, Cout)
    y = matmul_bias(a, bmat, bias, relu)
    return y.reshape(N, OH, OW, Cout)


def conv2d_bn_act(x, p, stride=1, relu=True):
    return conv2d_core(x, p["w"], p["bias"], stride=stride, relu=relu)


def residual_fwd(x, p):
    y = conv2d_bn_act(x, p["conv1"], stride=p["stride"], relu=True)
    y = conv2d_bn_act(y, p["conv2"], stride=1, relu=False)
    if "skip" in p:
        s = conv2d_bn_act(x, p["skip"], stride=p["stride"], relu=False)
    else:
        s = x
    return add_act(y, s, apply_relu=True)


def layer_fwd(x, plist):
    for p in plist:
        x = residual_fwd(x, p)
    return x


def upsample2x(x):
    # nn.Upsample(scale_factor=2) default: nearest neighbour.
    return jnp.repeat(jnp.repeat(x, 2, axis=1), 2, axis=2)


def kp_fwd(x, p):
    up1 = layer_fwd(x, p["top"])
    low1 = layer_fwd(x, p["low1"])
    if p["n"] > 1:
        low2 = kp_fwd(low1, p["low2"])
    else:
        low2 = layer_fwd(low1, p["low2"])
    low3 = layer_fwd(low2, p["low3"])
    up2 = upsample2x(low3)
    return add_act(up1, up2, apply_relu=False)


def fused_heads_fwd(x, heads):
    """Fused CenterNet heads sharing the same input x.

    heads: list of {"c1": conv3x3(+bias,relu), "c2": conv1x1(+bias)} params.
    Returns the per-head NHWC outputs as a list.
    """
    N, H, W, _ = x.shape
    # ---- fused c1: one matmul over the shared im2col A matrix.
    w1 = jnp.concatenate([h["c1"]["w"] for h in heads], axis=-1)
    b1 = jnp.concatenate([h["c1"]["bias"] for h in heads], axis=-1)
    mid = conv2d_core(x, w1, b1, stride=1, relu=True)       # (N, H, W, sum_mid) f32

    # ---- fused c2: block-diagonal 1x1 conv, output padded to 128 lanes.
    mids = [h["c1"]["w"].shape[-1] for h in heads]
    nouts = [h["c2"]["w"].shape[-1] for h in heads]
    total_mid = sum(mids)
    total_out = sum(nouts)
    pad_out = ((total_out + 127) // 128) * 128
    w2 = jnp.zeros((total_mid, pad_out), jnp.bfloat16)
    b2 = jnp.zeros((pad_out,), jnp.float32)
    ri = ro = 0
    for h, m, no in zip(heads, mids, nouts):
        w2 = w2.at[ri:ri + m, ro:ro + no].set(h["c2"]["w"].reshape(m, no))
        b2 = b2.at[ro:ro + no].set(h["c2"]["bias"])
        ri += m
        ro += no
    a = mid.reshape(N * H * W, total_mid).astype(jnp.bfloat16)
    z = matmul_bias(a, w2, b2, apply_relu=False).reshape(N, H, W, pad_out)

    outs = []
    ro = 0
    for no in nouts:
        outs.append(z[..., ro:ro + no])
        ro += no
    return outs


# ----------------------------------------------------------------------------
# ctdet_decode / roi_align (plain JAX glue; not defined in provided source)
# ----------------------------------------------------------------------------
def ctdet_decode_top1(hmap, regs, wh):
    # TODO(synk): ctdet_decode was not provided in the source module; this is the
    # standard CenterNet decode restricted to the single top-scoring detection.
    h = jax.nn.sigmoid(hmap)
    hmax = lax.reduce_window(h, -jnp.inf, lax.max, (3, 3, 1), (1, 1, 1), "SAME")
    h = h * (hmax == h).astype(h.dtype)
    H, W, C = h.shape
    flat = jnp.transpose(h, (2, 0, 1)).reshape(-1)        # class-major like torch (C,H,W)
    idx = jnp.argmax(flat)
    pix = idx % (H * W)
    ys = (pix // W).astype(jnp.float32)
    xs = (pix % W).astype(jnp.float32)
    reg = regs.reshape(H * W, 2)[pix]
    w_ = wh.reshape(H * W, 2)[pix]
    xs = xs + reg[0]
    ys = ys + reg[1]
    return jnp.stack([xs - w_[0] / 2.0, ys - w_[1] / 2.0,
                      xs + w_[0] / 2.0, ys + w_[1] / 2.0])


def roi_align_single(feat, box, out_h, out_w):
    # TODO(synk): torchvision.ops.roi_align uses an adaptive (data-dependent)
    # sampling_ratio; here we bilinearly sample one point per bin (aligned=False offsets).
    H, W, C = feat.shape
    x1, y1, x2, y2 = box[0], box[1], box[2], box[3]
    roi_w = jnp.maximum(x2 - x1, 1.0)
    roi_h = jnp.maximum(y2 - y1, 1.0)
    bin_w = roi_w / out_w
    bin_h = roi_h / out_h
    px = x1 + (jnp.arange(out_w, dtype=jnp.float32) + 0.5) * bin_w
    py = y1 + (jnp.arange(out_h, dtype=jnp.float32) + 0.5) * bin_h
    yy = py[:, None]
    xx = px[None, :]
    valid = (yy > -1.0) & (yy < H) & (xx > -1.0) & (xx < W)
    y = jnp.clip(yy, 0.0, H - 1.0)
    x = jnp.clip(xx, 0.0, W - 1.0)
    y0 = jnp.floor(y).astype(jnp.int32)
    x0 = jnp.floor(x).astype(jnp.int32)
    y1i = jnp.clip(y0 + 1, 0, H - 1)
    x1i = jnp.clip(x0 + 1, 0, W - 1)
    ly = y - y0.astype(jnp.float32)
    lx = x - x0.astype(jnp.float32)

    def g(yi, xi):
        return feat[yi, xi]                               # (out_h, out_w, C)

    val = (g(y0, x0) * ((1 - ly) * (1 - lx))[..., None]
           + g(y0, x1i) * ((1 - ly) * lx)[..., None]
           + g(y1i, x0) * (ly * (1 - lx))[..., None]
           + g(y1i, x1i) * (ly * lx)[..., None])
    return jnp.where(valid[..., None], val, 0.0)


# ----------------------------------------------------------------------------
# Deterministic parameter construction (BN folded, scale folded into weights,
# weights pre-cast to bf16; biases stay f32).
# ----------------------------------------------------------------------------
_BN_EPS = 1e-5
_BN_SCALE = 1.0 / np.sqrt(1.0 + _BN_EPS)


class KeyGen:
    def __init__(self, key):
        self.key = key

    def __call__(self):
        self.key, sub = jax.random.split(self.key)
        return sub


def make_conv_bn(kg, k, cin, cout, with_bn=True, bias_fill=0.0):
    w = jax.random.normal(kg(), (k, k, cin, cout), jnp.float32) * np.sqrt(2.0 / (k * k * cin))
    if with_bn:
        # BN folded in inference mode (mean=0, var=1, gamma=1, beta=0 defaults).
        w = w * _BN_SCALE
        bias = jnp.zeros((cout,), jnp.float32)
    else:
        bias = jnp.full((cout,), bias_fill, jnp.float32)
    return {"w": w.astype(jnp.bfloat16), "bias": bias}


def make_residual_p(kg, cin, cout, stride=1):
    p = {
        "conv1": make_conv_bn(kg, 3, cin, cout),
        "conv2": make_conv_bn(kg, 3, cout, cout),
        "stride": stride,
    }
    if stride != 1 or cin != cout:
        p["skip"] = make_conv_bn(kg, 1, cin, cout)
    return p


def make_layer_p(kg, cin, cout, modules, stride=1):
    ps = [make_residual_p(kg, cin, cout, stride)]
    ps += [make_residual_p(kg, cout, cout, 1) for _ in range(modules - 1)]
    return ps


def make_layer_revr_p(kg, cin, cout, modules):
    ps = [make_residual_p(kg, cin, cin, 1) for _ in range(modules - 1)]
    ps.append(make_residual_p(kg, cin, cout, 1))
    return ps


def make_kp_module_p(kg, n, dims, modules):
    curr_dim, next_dim = dims[0], dims[1]
    curr_mod, next_mod = modules[0], modules[1]
    p = {
        "n": n,
        "top": make_layer_p(kg, curr_dim, curr_dim, curr_mod, 1),
        "low1": make_layer_p(kg, curr_dim, next_dim, curr_mod, 2),
        "low3": make_layer_revr_p(kg, next_dim, curr_dim, curr_mod),
    }
    if n > 1:
        p["low2"] = make_kp_module_p(kg, n - 1, dims[1:], modules[1:])
    else:
        p["low2"] = make_layer_p(kg, next_dim, next_dim, next_mod, 1)
    return p


def make_kp_layer_p(kg, cnv_dim, curr_dim, out_dim, final_bias=0.0):
    return {
        "c1": make_conv_bn(kg, 3, cnv_dim, curr_dim, with_bn=False),
        "c2": make_conv_bn(kg, 1, curr_dim, out_dim, with_bn=False, bias_fill=final_bias),
    }


def build_params(key, n, nstack, dims, modules, cnv_dim, num_classes):
    kg = KeyGen(key)
    curr_dim = dims[0]
    params = {
        "nstack": nstack,
        "pre_conv": make_conv_bn(kg, 7, 3, 128),
        "pre_res": make_residual_p(kg, 128, curr_dim, stride=2),
        "kps": [make_kp_module_p(kg, n, dims, modules) for _ in range(nstack)],
        "cnvs": [make_conv_bn(kg, 3, curr_dim, cnv_dim) for _ in range(nstack)],
        "cnv_sum_image": make_conv_bn(kg, 3, 512, 256),
        "inters": [make_residual_p(kg, curr_dim, curr_dim) for _ in range(nstack - 1)],
        "inters_": [make_conv_bn(kg, 1, curr_dim, curr_dim) for _ in range(nstack - 1)],
        "cnvs_": [make_conv_bn(kg, 1, cnv_dim, curr_dim) for _ in range(nstack - 1)],
        "hmap": [make_kp_layer_p(kg, cnv_dim, curr_dim, num_classes, -2.19) for _ in range(nstack)],
        "regs": [make_kp_layer_p(kg, cnv_dim, curr_dim, 2) for _ in range(nstack)],
        "w_h_": [make_kp_layer_p(kg, cnv_dim, curr_dim, 2) for _ in range(nstack)],
        "hmap1": [make_kp_layer_p(kg, cnv_dim, curr_dim, num_classes, -2.19) for _ in range(nstack)],
        "regs1": [make_kp_layer_p(kg, cnv_dim, curr_dim, 2) for _ in range(nstack)],
        "w_h_1": [make_kp_layer_p(kg, cnv_dim, curr_dim, 2) for _ in range(nstack)],
    }
    return params


# ----------------------------------------------------------------------------
# exkp forward (inference-mode semantics: self.training == False)
# ----------------------------------------------------------------------------
def exkp_forward(image_nchw, params):
    x = jnp.transpose(image_nchw, (0, 2, 3, 1)).astype(jnp.float32)  # NCHW -> NHWC
    nstack = params["nstack"]

    # self.pre
    inter = conv2d_bn_act(x, params["pre_conv"], stride=2, relu=True)
    inter = residual_fwd(inter, params["pre_res"])

    cnv = None
    for ind in range(nstack):
        kp = kp_fwd(inter, params["kps"][ind])
        cnv = conv2d_bn_act(kp, params["cnvs"][ind], relu=True)
        if ind < nstack - 1:
            i1 = conv2d_bn_act(inter, params["inters_"][ind], relu=False)
            c1 = conv2d_bn_act(cnv, params["cnvs_"][ind], relu=False)
            inter = add_act(i1, c1, apply_relu=True)
            inter = residual_fwd(inter, params["inters"][ind])

    ind = nstack - 1
    # All five heads that consume `cnv` share the same im2col A matrix: fuse.
    hmap1, regs1, w_h_1, regs_o, w_h_o = fused_heads_fwd(
        cnv,
        [params["hmap1"][ind], params["regs1"][ind], params["w_h_1"][ind],
         params["regs"][ind], params["w_h_"][ind]],
    )

    N, OH, OW, _ = cnv.shape
    cnv2 = []
    for i in range(N):
        bbox = ctdet_decode_top1(hmap1[i], regs1[i], w_h_1[i])
        x1, y1, x2, y2 = bbox[0], bbox[1], bbox[2], bbox[3]
        bbox_w1 = x2 - x1
        inc_half = (1.5 * bbox_w1 - bbox_w1) / 2.0
        # mutations from the torch code: [3]=y1(high), [1]=0, [0]-=inc/2, [2]+=inc/2
        box = jnp.stack([x1 - inc_half, jnp.asarray(0.0, jnp.float32), x2 + inc_half, y1])
        roi = roi_align_single(cnv[i], box, OH, OW)           # (OH, OW, cnv_dim)
        cnv2.append(jnp.concatenate([cnv[i], roi], axis=-1))  # channel concat -> 512
    cnv3 = jnp.stack(cnv2, axis=0)                            # (N, OH, OW, 512)

    sum_image = conv2d_bn_act(cnv3, params["cnv_sum_image"], relu=True)

    # Eval-mode branch of the torch forward: only ind == nstack - 1 is emitted.
    (hm,) = fused_heads_fwd(sum_image, [params["hmap"][ind]])
    outs = [[jnp.transpose(hm, (0, 3, 1, 2)),
             jnp.transpose(regs_o, (0, 3, 1, 2)),
             jnp.transpose(w_h_o, (0, 3, 1, 2))]]
    return outs


# ----------------------------------------------------------------------------
# main
# ----------------------------------------------------------------------------
if __name__ == "__main__":
    # small configuration consistent with the module structure
    N_HG = 1
    NSTACK = 1
    DIMS = [32, 48]
    MODULES = [1, 1]
    CNV_DIM = 256       # forced by the hard-coded 512->256 cnv_sum_image
    NUM_CLASSES = 8

    root = jax.random.PRNGKey(0)
    k_img, k_par = jax.random.split(root)
    image = jax.random.normal(k_img, (2, 3, 32, 32), jnp.float32)   # NCHW like torch

    params = build_params(k_par, N_HG, NSTACK, DIMS, MODULES, CNV_DIM, NUM_CLASSES)

    outs = exkp_forward(image, params)
    outs = jax.block_until_ready(outs)

    hm, rg, wh = outs[-1]
    assert hm.shape == (2, NUM_CLASSES, 8, 8)
    assert rg.shape == (2, 2, 8, 8)
    assert wh.shape == (2, 2, 8, 8)
    assert all(bool(jnp.all(jnp.isfinite(t))) for t in (hm, rg, wh))
    print("KERNEL_OK")
</pallas_src>

<mosaic_0001>
module attributes {stable_mosaic.version = 11 : i64} {
  func.func @_mm_bias_kernel(%arg0: i32, %arg1: i32, %arg2: memref<256x147xbf16, #tpu.memory_space<vmem>>, %arg3: memref<147x128xbf16, #tpu.memory_space<vmem>>, %arg4: memref<1x128xf32, #tpu.memory_space<vmem>>, %arg5: memref<256x128xf32, #tpu.memory_space<vmem>>) attributes {dimension_semantics = [#tpu.dimension_semantics<parallel>, #tpu.dimension_semantics<parallel>], iteration_bounds = array<i64: 2, 1>, scalar_prefetch = 0 : i64, scratch_operands = 0 : i64, tpu.core_type = #tpu.core_type<tc>, window_params = [{transform_indices = @transform_0, window_bounds = array<i64: 256, 147>}, {transform_indices = @transform_1, window_bounds = array<i64: 147, 128>}, {transform_indices = @transform_2, window_bounds = array<i64: 1, 128>}, {transform_indices = @transform_3, window_bounds = array<i64: 256, 128>}]} {
    %c0 = arith.constant 0 : index
    %c0_0 = arith.constant 0 : index
    %0 = vector.load %arg2[%c0, %c0_0] : memref<256x147xbf16, #tpu.memory_space<vmem>>, vector<256x147xbf16>
    %c0_1 = arith.constant 0 : index
    %c0_2 = arith.constant 0 : index
    %1 = vector.load %arg3[%c0_1, %c0_2] : memref<147x128xbf16, #tpu.memory_space<vmem>>, vector<147x128xbf16>
    %cst = arith.constant dense<0.000000e+00> : vector<256x128xf32>
    %2 = tpu.matmul %0, %1, %cst {dimension_numbers = #tpu.dot_dimension_numbers<[1], [0], [0], [1], [0, 0, 1, 1], [], []>} : vector<256x147xbf16>, vector<147x128xbf16>, vector<256x128xf32> -> vector<256x128xf32>
    %c0_3 = arith.constant 0 : index
    %c0_4 = arith.constant 0 : index
    %3 = vector.load %arg4[%c0_3, %c0_4] : memref<1x128xf32, #tpu.memory_space<vmem>>, vector<1x128xf32>
    %4 = vector.broadcast %3 : vector<1x128xf32> to vector<256x128xf32>
    %5 = arith.addf %2, %4 : vector<256x128xf32>
    %cst_5 = arith.constant 0.000000e+00 : f32
    %6 = vector.broadcast %cst_5 : f32 to vector<256x128xf32>
    %7 = arith.maximumf %5, %6 : vector<256x128xf32>
    %c0_6 = arith.constant 0 : index
    %c0_7 = arith.constant 0 : index
    %8 = vector.load %arg5[%c0_6, %c0_7] : memref<256x128xf32, #tpu.memory_space<vmem>>, vector<256x128xf32>
    tpu.vector_store %arg5[%c0_6, %c0_7], %7 {strides = array<i32>} : memref<256x128xf32, #tpu.memory_space<vmem>>, vector<256x128xf32>,
    return
  }
  func.func @transform_0(%arg0: i32, %arg1: i32) -> (i32, i32) {
    %c0_i32 = arith.constant 0 : i32
    %c0_i32_0 = arith.constant 0 : i32
    return %arg0, %c0_i32 : i32, i32
  }
  func.func @transform_1(%arg0: i32, %arg1: i32) -> (i32, i32) {
    %c0_i32 = arith.constant 0 : i32
    %c0_i32_0 = arith.constant 0 : i32
    return %c0_i32, %arg1 : i32, i32
  }
  func.func @transform_2(%arg0: i32, %arg1: i32) -> (i32, i32) {
    %c0_i32 = arith.constant 0 : i32
    %c0_i32_0 = arith.constant 0 : i32
    return %c0_i32, %arg1 : i32, i32
  }
  func.func @transform_3(%arg0: i32, %arg1: i32) -> (i32, i32) {
    %c0_i32 = arith.constant 0 : i32
    return %arg0, %arg1 : i32, i32
  }
}

</mosaic_0001>

<llo_original>
// kernel: tpu_custom_call.1
$region0: #{tpu_custom_call.1}
  #allocation0 [shape = 'u32[]', space=smem, size = 0x4, offset = 0x4, fixed_abs, tag = 'smem constant byte address 0x4 - core index']
  #allocation1 [shape = 'u32[144,128]{1,0:T(1,128)}', space=vmem, size = 0x12000, scoped, tag = 'internal scratch']
  %s0 = inlined_call_operand.vmem [shape: bf16[512,147], index: 0, kind: input, shape index: {}]
  %s1 = inlined_call_operand.vmem [shape: bf16[147,128], index: 1, kind: input, shape index: {}]
  %s2 = inlined_call_operand.vmem [shape: f32[1,128], index: 2, kind: input, shape index: {}]
  %s3 = inlined_call_operand.hbm [shape: f32[512,128], index: 3, kind: output, shape index: {}]
  %s4 = sld [smem:[#allocation0]]
  $region45: #{tpu_custom_call.1} parent=0
    _
  %s6 = ssub.s32 1, %s4
  %s7 = scalar_select 0, %s6, %s4
  $region1: #{tpu_custom_call.1} parent=0
    #allocation2 [shape = 'u8[262144]{0}', space=vmem, size = 0x40000, scoped, tag = 'output window, operand 0']
    #allocation3 [shape = 's32[2]{0}', space=sflag, size = 0x8, scoped, tag = 'scoped memory for tpu_custom_call.1']
    %8 = vsyncpa [#allocation3], 0
    %s9 = scalar_lea.sflag [#allocation3], 1
    %10 = vsyncpa %s9, 0
    loop: start=0, step=1, limit=4
    $region2: #{tpu_custom_call.1} parent=1 // loop_pre_header
      _
    $region3: #{tpu_custom_call.1} parent=1 // loop_header
      %s12 = sphi 0, %s16
      %p13 = scmp.ge.s32.totalorder %s12, 4
      %s19 = sphi 0, %s31
      %s20 = sphi 0, %s27
      %s21 = sphi 0, %s19
      %s22 = sphi 0, %s20
      %s23 = sphi 0, %s21
      %s24 = sphi 0, %s22
      %s34 = sphi 0, %s36
      %s37 = sphi 0, %s34
      %s38 = sphi 0, %s37
      %s54 = sphi 0, %s38
      %s60 = sphi 0, %s62
      %s63 = sphi 0, %s60
      %s64 = sphi 0, %s63
      %s80 = sphi 0, %s64
      %s86 = sphi 0, %s88
      %s89 = sphi 0, %s86
      %s90 = sphi 0, %s89
      %s106 = sphi 0, %s90
      %s114 = sphi 0, %s116
      %s117 = sphi 0, %s114
      %s118 = sphi 0, %s117
      %s134 = sphi 0, %s118
    $region4: #{tpu_custom_call.1} parent=1 // loop_header_branch
      %15 = sbr.rel (%p13) target = $region8
    $region5: #{tpu_custom_call.1} parent=1 // loop_body
      %s17 = ssub.s32 %s12, 1
      %s18 = ssub.s32 %s12, 2
      %s25 = sadd.s32 1, %s20
      %p26 = scmp.ge.s32.totalorder %s25, 1
      %s27 = scalar_select %p26, 0, %s25
      %s28 = sadd.s32 1, %s19
      %s29 = scalar_select %p26, %s28, %s19
      %p30 = scmp.ge.s32.totalorder %s29, 2
      %s31 = scalar_select %p30, 0, %s29
      %s32 = ssub.s32 %s19, %s31
      %p33 = scmp.eq.s32.totalorder %s32, 0
      %s35 = sadd.s32 %s34, 1
      %s36 = scalar_select %p33, %s34, %s35
      %p39 = pneg %p33
      %p40 = scmp.eq.s32.totalorder %s12, 1
      %p41 = por %p39, %p40
      %p42 = scmp.ne.s32.totalorder %s34, %s37
      %p43 = scmp.eq.s32.totalorder %s12, 0
      %p44 = por %p42, %p43
      %p45 = scmp.ne.s32.totalorder %s34, %s37
      %p46 = scmp.eq.s32.totalorder %s17, 1
      %p47 = por %p45, %p46
      %p48 = scmp.ne.s32.totalorder %s37, %s38
      %p49 = scmp.eq.s32.totalorder %s17, 0
      %p50 = por %p48, %p49
      %p51 = scmp.ne.s32.totalorder %s37, %s38
      %p52 = scmp.eq.s32.totalorder %s18, 1
      %p53 = por %p51, %p52
      %p55 = scmp.ne.s32.totalorder %s38, %s54
      %p56 = scmp.eq.s32.totalorder %s18, 0
      %p57 = por %p55, %p56
      %s58 = ssub.s32 %s20, %s27
      %p59 = scmp.eq.s32.totalorder %s58, 0
      %s61 = sadd.s32 %s60, 1
      %s62 = scalar_select %p59, %s60, %s61
      %p65 = pneg %p59
      %p66 = scmp.eq.s32.totalorder %s12, 1
      %p67 = por %p65, %p66
      %p68 = scmp.ne.s32.totalorder %s60, %s63
      %p69 = scmp.eq.s32.totalorder %s12, 0
      %p70 = por %p68, %p69
      %p71 = scmp.ne.s32.totalorder %s60, %s63
      %p72 = scmp.eq.s32.totalorder %s17, 1
      %p73 = por %p71, %p72
      %p74 = scmp.ne.s32.totalorder %s63, %s64
      %p75 = scmp.eq.s32.totalorder %s17, 0
      %p76 = por %p74, %p75
      %p77 = scmp.ne.s32.totalorder %s63, %s64
      %p78 = scmp.eq.s32.totalorder %s18, 1
      %p79 = por %p77, %p78
      %p81 = scmp.ne.s32.totalorder %s64, %s80
      %p82 = scmp.eq.s32.totalorder %s18, 0
      %p83 = por %p81, %p82
      %s84 = ssub.s32 %s20, %s27
      %p85 = scmp.eq.s32.totalorder %s84, 0
      %s87 = sadd.s32 %s86, 1
      %s88 = scalar_select %p85, %s86, %s87
      %p91 = pneg %p85
      %p92 = scmp.eq.s32.totalorder %s12, 1
      %p93 = por %p91, %p92
      %p94 = scmp.ne.s32.totalorder %s86, %s89
      %p95 = scmp.eq.s32.totalorder %s12, 0
      %p96 = por %p94, %p95
      %p97 = scmp.ne.s32.totalorder %s86, %s89
      %p98 = scmp.eq.s32.totalorder %s17, 1
      %p99 = por %p97, %p98
      %p100 = scmp.ne.s32.totalorder %s89, %s90
      %p101 = scmp.eq.s32.totalorder %s17, 0
      %p102 = por %p100, %p101
      %p103 = scmp.ne.s32.totalorder %s89, %s90
      %p104 = scmp.eq.s32.totalorder %s18, 1
      %p105 = por %p103, %p104
      %p107 = scmp.ne.s32.totalorder %s90, %s106
      %p108 = scmp.eq.s32.totalorder %s18, 0
      %p109 = por %p107, %p108
      %s110 = ssub.s32 %s19, %s31
      %s111 = ssub.s32 %s20, %s27
      %s112 = sor.u32 %s110, %s111
      %p113 = scmp.eq.s32.totalorder %s112, 0
      %s115 = sadd.s32 %s114, 1
      %s116 = scalar_select %p113, %s114, %s115
      %p119 = pneg %p113
      %p120 = scmp.eq.s32.totalorder %s12, 1
      %p121 = por %p119, %p120
      %p122 = scmp.ne.s32.totalorder %s114, %s117
      %p123 = scmp.eq.s32.totalorder %s12, 0
      %p124 = por %p122, %p123
      %p125 = scmp.ne.s32.totalorder %s114, %s117
      %p126 = scmp.eq.s32.totalorder %s17, 1
      %p127 = por %p125, %p126
      %p128 = scmp.ne.s32.totalorder %s117, %s118
      %p129 = scmp.eq.s32.totalorder %s17, 0
      %p130 = por %p128, %p129
      %p131 = scmp.ne.s32.totalorder %s117, %s118
      %p132 = scmp.eq.s32.totalorder %s18, 1
      %p133 = por %p131, %p132
      %p135 = scmp.ne.s32.totalorder %s118, %s134
      %p136 = scmp.eq.s32.totalorder %s18, 0
      %p137 = por %p135, %p136
      %p138 = scmp.le.s32.totalorder 1, %s12
      %p139 = scmp.lt.s32.totalorder %s12, 3
      %p140 = pnand %p138, %p139
      %p141 = pneg %p140
      // Predicated region
      $region9: #{tpu_custom_call.1} parent=5 // pred_check
        _
      $region10: #{tpu_custom_call.1} parent=5 // pred_check_branch
        %143 = sbr.rel (%p140) target = $region12
      $region11: #{tpu_custom_call.1} parent=5 // pred_region
        %s144 = ssub.s32 %s12, 1
        // Predicated region
        $region13: #{tpu_custom_call.1} parent=11 // pred_check
          %p145 = pneg %p76
        $region14: #{tpu_custom_call.1} parent=11 // pred_check_branch
          %147 = sbr.rel (%p145) target = $region16
        $region15: #{tpu_custom_call.1} parent=11 // pred_region
          %p148 = scmp.lt.s32.totalorder %s22, 0
          %s149 = scalar_select %p148, %s22, 0
          %s150 = smul.addr %s149, 4
          %s151 = scalar_lea.vmem %s1, %s150
        $region16: #{tpu_custom_call.1} parent=11 // pred_fallthru
          _
        // Predicated region
        $region17: #{tpu_custom_call.1} parent=11 // pred_check
          %p152 = pneg %p102
        $region18: #{tpu_custom_call.1} parent=11 // pred_check_branch
          %154 = sbr.rel (%p152) target = $region20
        $region19: #{tpu_custom_call.1} parent=11 // pred_region
          %p155 = scmp.lt.s32.totalorder %s22, 0
          %s156 = scalar_select %p155, %s22, 0
          %s157 = scalar_lea.vmem %s2, %s156
        $region20: #{tpu_custom_call.1} parent=11 // pred_fallthru
          _
      $region12: #{tpu_custom_call.1} parent=5 // pred_fallthru
        _
      %p158 = scmp.lt.s32.totalorder %s12, 2
      // Predicated region
      $region21: #{tpu_custom_call.1} parent=5 // pred_check
        %p159 = pneg %p158
      $region22: #{tpu_custom_call.1} parent=5 // pred_check_branch
        %161 = sbr.rel (%p159) target = $region24
      $region23: #{tpu_custom_call.1} parent=5 // pred_region
        // Predicated region
        $region25: #{tpu_custom_call.1} parent=23 // pred_check
          %p162 = pneg %p44
        $region26: #{tpu_custom_call.1} parent=23 // pred_check_branch
          %164 = sbr.rel (%p162) target = $region28
        $region27: #{tpu_custom_call.1} parent=23 // pred_region
          %s165 = smul.u32 32, %s19
          %p166 = scmp.lt.s32.totalorder %s165, 63
          %s167 = scalar_select %p166, %s165, 63
          %s168 = smul.addr %s167, 2
          %s169 = smul.addr %s168, 4
          %s170 = scalar_lea.vmem %s0, %s169
          %s171 = smul.u32 32, %s19
        $region28: #{tpu_custom_call.1} parent=23 // pred_fallthru
          _
      $region24: #{tpu_custom_call.1} parent=5 // pred_fallthru
        _
      %p172 = scmp.le.s32.totalorder 1, %s12
      %p173 = scmp.lt.s32.totalorder %s12, 3
      %p174 = pnand %p172, %p173
      %p175 = pneg %p174
      // Predicated region
      $region29: #{tpu_custom_call.1} parent=5 // pred_check
        _
      $region30: #{tpu_custom_call.1} parent=5 // pred_check_branch
        %177 = sbr.rel (%p174) target = $region32
      $region31: #{tpu_custom_call.1} parent=5 // pred_region
        %s178 = ssub.s32 %s12, 1
        %s179 = smul.u32 32, %s21
        %p180 = scmp.lt.s32.totalorder %s179, 63
        %s181 = scalar_select %p180, %s179, 63
        %s182 = smul.addr %s181, 2
        %s183 = smul.addr %s182, 4
        %s184 = scalar_lea.vmem %s0, %s183
        %p185 = pneg %p50
        %p186 = pneg %p47
        %p187 = scmp.lt.s32.totalorder %s22, 0
        %s188 = scalar_select %p187, %s22, 0
        %s189 = smul.addr %s188, 4
        %s190 = scalar_lea.vmem %s1, %s189
        %p191 = pneg %p76
        %p192 = pneg %p73
        %p193 = scmp.lt.s32.totalorder %s22, 0
        %s194 = scalar_select %p193, %s22, 0
        %s195 = scalar_lea.vmem %s2, %s194
        %p196 = pneg %p102
        %p197 = pneg %p99
        %p198 = pneg %p130
        %p199 = pneg %p127
        %s200 = sand.u32 %s117, 1
        %s201 = scalar_lea.sflag [#allocation3], %s200
        %s202 = sand.u32 %s117, 1
        %s203 = smul.addr %s202, 256
        %s204 = scalar_lea.vmem [#allocation2], %s203
        %s205 = smul.u32 32, %s21
        %p206 = scmp.lt.s32.totalorder %s205, 63
        %s207 = scalar_select %p206, %s205, 63
        %s208 = smul.addr %s207, 2
        %s209 = smul.addr %s208, 4
        %s210 = scalar_lea.vmem %s0, %s209
        %s211 = smul.u32 32, %s21
        %p212 = scmp.lt.s32.totalorder %s22, 0
        %s213 = scalar_select %p212, %s22, 0
        %s214 = smul.addr %s213, 4
        %s215 = scalar_lea.vmem %s1, %s214
        %p216 = scmp.lt.s32.totalorder %s22, 0
        %s217 = scalar_select %p216, %s22, 0
        %s218 = scalar_lea.vmem %s2, %s217
        %s219 = smul.u32 32, %s21
        %v221 = vld [vmem:[%s210] sm:$0xff]
        %v222 = vld [vmem:[%s210 + $0x8] sm:$0xff]
        %v223 = vld [vmem:[%s210 + $0x10] sm:$0xff]
        %v224 = vld [vmem:[%s210 + $0x18] sm:$0xff]
        %v225 = vld [vmem:[%s210 + $0x20] sm:$0xff]
        %v226 = vld [vmem:[%s210 + $0x28] sm:$0xff]
        %v227 = vld [vmem:[%s210 + $0x30] sm:$0xff]
        %v228 = vld [vmem:[%s210 + $0x38] sm:$0xff]
        %v229 = vld [vmem:[%s210 + $0x40] sm:$0xff]
        %v230 = vld [vmem:[%s210 + $0x48] sm:$0xff]
        %v231 = vld [vmem:[%s210 + $0x50] sm:$0xff]
        %v232 = vld [vmem:[%s210 + $0x58] sm:$0xff]
        %v233 = vld [vmem:[%s210 + $0x60] sm:$0xff]
        %v234 = vld [vmem:[%s210 + $0x68] sm:$0xff]
        %v235 = vld [vmem:[%s210 + $0x70] sm:$0xff]
        %v236 = vld [vmem:[%s210 + $0x78] sm:$0xff]
        %v237 = vld [vmem:[%s210 + $0x80] sm:$0xff]
        %v238 = vld [vmem:[%s210 + $0x88] sm:$0xff]
        %v239 = vld [vmem:[%s210 + $0x90] sm:$0xff]
        %v240 = vld [vmem:[%s210 + $0x98] sm:$0xff]
        %v241 = vld [vmem:[%s210 + $0xa0] sm:$0xff]
        %v242 = vld [vmem:[%s210 + $0xa8] sm:$0xff]
        %v243 = vld [vmem:[%s210 + $0xb0] sm:$0xff]
        %v244 = vld [vmem:[%s210 + $0xb8] sm:$0xff]
        %v245 = vld [vmem:[%s210 + $0xc0] sm:$0xff]
        %v246 = vld [vmem:[%s210 + $0xc8] sm:$0xff]
        %v247 = vld [vmem:[%s210 + $0xd0] sm:$0xff]
        %v248 = vld [vmem:[%s210 + $0xd8] sm:$0xff]
        %v249 = vld [vmem:[%s210 + $0xe0] sm:$0xff]
        %v250 = vld [vmem:[%s210 + $0xe8] sm:$0xff]
        %v251 = vld [vmem:[%s210 + $0xf0] sm:$0xff]
        %v252 = vld [vmem:[%s210 + $0xf8] sm:$0xff]
        %v253 = vld [vmem:[%s215] sm:$0xf]
        %v254 = vld [vmem:[%s215 + $0x4] sm:$0xf]
        %v255 = vld [vmem:[%s215 + $0x8] sm:$0xf]
        %v256 = vld [vmem:[%s215 + $0xc] sm:$0xf]
        %v257 = vld [vmem:[%s215 + $0x10] sm:$0xf]
        %v258 = vld [vmem:[%s215 + $0x14] sm:$0xf]
        %v259 = vld [vmem:[%s215 + $0x18] sm:$0xf]
        %v260 = vld [vmem:[%s215 + $0x1c] sm:$0xf]
        %v261 = vld [vmem:[%s215 + $0x20] sm:$0xf]
        %v262 = vld [vmem:[%s215 + $0x24] sm:$0xf]
        %v263 = vld [vmem:[%s215 + $0x28] sm:$0xf]
        %v264 = vld [vmem:[%s215 + $0x2c] sm:$0xf]
        %v265 = vld [vmem:[%s215 + $0x30] sm:$0xf]
        %v266 = vld [vmem:[%s215 + $0x34] sm:$0xf]
        %v267 = vld [vmem:[%s215 + $0x38] sm:$0xf]
        %v268 = vld [vmem:[%s215 + $0x3c] sm:$0xf]
        %v269 = vld [vmem:[%s215 + $0x40] sm:$0xf]
        %v270 = vld [vmem:[%s215 + $0x44] sm:$0xf]
        %v271 = vld [vmem:[%s215 + $0x48] sm:$0x3]
        %v272 = vld [vmem:[%s218] sm:$0x1]
        %v274 = vlaneseq
        %v275 = vshrl.u32 %v274, 7
        %v276 = vsub.s32 0, %v275
        %v277 = vrot.slane %v272, %v276
        %v311 = vunpack.c.l.b16 %v221
        %v312 = vunpack.c.h.b16 %v221
        %v313 = vunpack.c.l.b16 %v222
        %v314 = vunpack.c.h.b16 %v222
        %v315 = vunpack.c.l.b16 %v223
        %v316 = vunpack.c.h.b16 %v223
        %v317 = vunpack.c.l.b16 %v224
        %v318 = vunpack.c.h.b16 %v224
        %v319 = vunpack.c.l.b16 %v225
        %v320 = vunpack.c.h.b16 %v225
        %v321 = vunpack.c.l.b16 %v226
        %v322 = vunpack.c.h.b16 %v226
        %v323 = vunpack.c.l.b16 %v227
        %v324 = vunpack.c.h.b16 %v227
        %v325 = vunpack.c.l.b16 %v228
        %v326 = vunpack.c.h.b16 %v228
        %v327 = vunpack.c.l.b16 %v229
        %v328 = vunpack.c.h.b16 %v229
        %v329 = vunpack.c.l.b16 %v230
        %v330 = vunpack.c.h.b16 %v230
        %v331 = vunpack.c.l.b16 %v231
        %v332 = vunpack.c.h.b16 %v231
        %v333 = vunpack.c.l.b16 %v232
        %v334 = vunpack.c.h.b16 %v232
        %v335 = vunpack.c.l.b16 %v233
        %v336 = vunpack.c.h.b16 %v233
        %v337 = vunpack.c.l.b16 %v234
        %v338 = vunpack.c.h.b16 %v234
        %v339 = vunpack.c.l.b16 %v235
        %v340 = vunpack.c.h.b16 %v235
        %v341 = vunpack.c.l.b16 %v236
        %v342 = vunpack.c.h.b16 %v236
        %v343 = vunpack.c.l.b16 %v237
        %v344 = vunpack.c.h.b16 %v237
        %v345 = vunpack.c.l.b16 %v238
        %v346 = vunpack.c.h.b16 %v238
        %v347 = vunpack.c.l.b16 %v239
        %v348 = vunpack.c.h.b16 %v239
        %v349 = vunpack.c.l.b16 %v240
        %v350 = vunpack.c.h.b16 %v240
        %v351 = vunpack.c.l.b16 %v241
        %v352 = vunpack.c.h.b16 %v241
        %v353 = vunpack.c.l.b16 %v242
        %v354 = vunpack.c.h.b16 %v242
        %v355 = vunpack.c.l.b16 %v243
        %v356 = vunpack.c.h.b16 %v243
        %v357 = vunpack.c.l.b16 %v244
        %v358 = vunpack.c.h.b16 %v244
        %v359 = vunpack.c.l.b16 %v245
        %v360 = vunpack.c.h.b16 %v245
        %v361 = vunpack.c.l.b16 %v246
        %v362 = vunpack.c.h.b16 %v246
        %v363 = vunpack.c.l.b16 %v247
        %v364 = vunpack.c.h.b16 %v247
        %v365 = vunpack.c.l.b16 %v248
        %v366 = vunpack.c.h.b16 %v248
        %v367 = vunpack.c.l.b16 %v249
        %v368 = vunpack.c.h.b16 %v249
        %v369 = vunpack.c.l.b16 %v250
        %v370 = vunpack.c.h.b16 %v250
        %v371 = vunpack.c.l.b16 %v251
        %v372 = vunpack.c.h.b16 %v251
        %v373 = vunpack.c.l.b16 %v252
        %v374 = vunpack.c.h.b16 %v252
        %v375 = vpack.c.b16 %v313, %v311
        %v376 = vpack.c.b16 %v314, %v312
        %v377 = vpack.c.b16 %v317, %v315
        %v378 = vpack.c.b16 %v318, %v316
        %v379 = vpack.c.b16 %v321, %v319
        %v380 = vpack.c.b16 %v322, %v320
        %v381 = vpack.c.b16 %v325, %v323
        %v382 = vpack.c.b16 %v326, %v324
        %v383 = vpack.c.b16 %v329, %v327
        %v384 = vpack.c.b16 %v330, %v328
        %v385 = vpack.c.b16 %v333, %v331
        %v386 = vpack.c.b16 %v334, %v332
        %v387 = vpack.c.b16 %v337, %v335
        %v388 = vpack.c.b16 %v338, %v336
        %v389 = vpack.c.b16 %v341, %v339
        %v390 = vpack.c.b16 %v342, %v340
        %v391 = vpack.c.b16 %v345, %v343
        %v392 = vpack.c.b16 %v346, %v344
        %v393 = vpack.c.b16 %v349, %v347
        %v394 = vpack.c.b16 %v350, %v348
        %v395 = vpack.c.b16 %v353, %v351
        %v396 = vpack.c.b16 %v354, %v352
        %v397 = vpack.c.b16 %v357, %v355
        %v398 = vpack.c.b16 %v358, %v356
        %v399 = vpack.c.b16 %v361, %v359
        %v400 = vpack.c.b16 %v362, %v360
        %v401 = vpack.c.b16 %v365, %v363
        %v402 = vpack.c.b16 %v366, %v364
        %v403 = vpack.c.b16 %v369, %v367
        %v404 = vpack.c.b16 %v370, %v368
        %v405 = vpack.c.b16 %v373, %v371
        %v406 = vpack.c.b16 %v374, %v372
        %v442 = vunpack.c.l.b16 %v253
        %v443 = vunpack.c.l.b16 %v254
        %v444 = vunpack.c.l.b16 %v255
        %v445 = vunpack.c.l.b16 %v256
        %v446 = vunpack.c.l.b16 %v257
        %v447 = vunpack.c.l.b16 %v258
        %v448 = vunpack.c.l.b16 %v259
        %v449 = vunpack.c.l.b16 %v260
        %v450 = vunpack.c.l.b16 %v261
        %v451 = vunpack.c.l.b16 %v262
        %v452 = vunpack.c.l.b16 %v263
        %v453 = vunpack.c.l.b16 %v264
        %v454 = vunpack.c.l.b16 %v265
        %v455 = vunpack.c.l.b16 %v266
        %v456 = vunpack.c.l.b16 %v267
        %v457 = vunpack.c.l.b16 %v268
        %v458 = vunpack.c.l.b16 %v269
        %v459 = vunpack.c.l.b16 %v270
        %v460 = vunpack.c.l.b16 %v271
        %v461 = vpack.c.b16 %v443, %v442
        %v462 = vpack.c.b16 %v445, %v444
        %v463 = vpack.c.b16 %v447, %v446
        %v464 = vpack.c.b16 %v449, %v448
        %v465 = vpack.c.b16 %v451, %v450
        %v466 = vpack.c.b16 %v453, %v452
        %v467 = vpack.c.b16 %v455, %v454
        %v468 = vpack.c.b16 %v457, %v456
        %v469 = vpack.c.b16 %v459, %v458
        %v470 = vpack.c.b16 %v460, %v460
        %vm480 = vcmask 154624
        %v482 = vsel %vm480, %v376, 0
        %v485 = vsel %vm480, %v378, 0
        %v488 = vsel %vm480, %v380, 0
        %v491 = vsel %vm480, %v382, 0
        %v494 = vsel %vm480, %v384, 0
        %v497 = vsel %vm480, %v386, 0
        %v500 = vsel %vm480, %v388, 0
        %v503 = vsel %vm480, %v390, 0
        %v506 = vsel %vm480, %v392, 0
        %v509 = vsel %vm480, %v394, 0
        %v512 = vsel %vm480, %v396, 0
        %v515 = vsel %vm480, %v398, 0
        %v518 = vsel %vm480, %v400, 0
        %v521 = vsel %vm480, %v402, 0
        %v524 = vsel %vm480, %v404, 0
        %v527 = vsel %vm480, %v406, 0
        %vm529 = vcmask 1040384
        %vm530 = vcmask 1041408
        %v531 = vsel %vm529, 4294967295, 65535
        %v532 = vsel %vm530, %v531, 0
        %v534 = vand.u32 %v470, %v532
        %536 = vmatprep.subr.bf16.mxu0 0
        %537 = vmatpush1.bf16.msra.mxu0 %v468
        %538 = vmatprep.subr.bf16.mxu0 0
        %539 = vmatpush1.bf16.msra.mxu0 %v467
        %540 = vmatprep.subr.bf16.mxu0 0
        %541 = vmatpush1.bf16.msra.mxu0 %v466
        %542 = vmatprep.subr.bf16.mxu0 0
        %543 = vmatpush1.bf16.msra.mxu0 %v465
        %544 = vmatprep.subr.bf16.mxu0 0
        %545 = vmatpush1.bf16.msra.mxu0 %v464
        %546 = vmatprep.subr.bf16.mxu0 0
        %547 = vmatpush1.bf16.msra.mxu0 %v463
        %548 = vmatprep.subr.bf16.mxu0 0
        %549 = vmatpush1.bf16.msra.mxu0 %v462
        %550 = vmatprep.subr.bf16.mxu0 0
        %551 = vmatpush1.bf16.msra.mxu0 %v461
        %552 = vmatprep.subr.bf16.mxu0 0
        %553 = vmatpush2.bf16.msra.mxu0 0
        %554 = vmatprep.subr.bf16.mxu0 0
        %555 = vmatpush2.bf16.msra.mxu0 0
        %556 = vmatprep.subr.bf16.mxu0 0
        %557 = vmatpush2.bf16.msra.mxu0 0
        %558 = vmatprep.subr.bf16.mxu0 0
        %559 = vmatpush2.bf16.msra.mxu0 0
        %560 = vmatprep.subr.bf16.mxu0 0
        %561 = vmatpush2.bf16.msra.mxu0 0
        %562 = vmatprep.subr.bf16.mxu0 0
        %563 = vmatpush2.bf16.msra.mxu0 0
        %564 = vmatprep.subr.bf16.mxu0 0
        %565 = vmatpush2.bf16.msra.mxu0 %v534
        %566 = vmatprep.subr.bf16.mxu0 0
        %567 = vmatpush2.bf16.msra.mxu0 %v469
        %568 = vmatprep.mubr.bf16.mxu0 %v482
        %569 = vmatmul.mubr.bf16.gmra.mxu0 %v375
        %v570 = vpop.f32.mrf.mxu0
        %v571 = vadd.f32 %v277, %v570
        %v572 = vpop.f32.mrf.mxu0
        %v573 = vpop.f32.mrf.mxu0
        %v574 = vadd.f32 %v277, %v573
        %v575 = vpop.f32.mrf.mxu0
        %576 = vmatprep.mubr.bf16.mxu0 %v485
        %577 = vmatmul.mubr.bf16.gmra.mxu0 %v377
        %v578 = vpop.f32.mrf.mxu0
        %v579 = vadd.f32 %v277, %v578
        %v580 = vpop.f32.mrf.mxu0
        %v581 = vpop.f32.mrf.mxu0
        %v582 = vadd.f32 %v277, %v581
        %v583 = vpop.f32.mrf.mxu0
        %584 = vmatprep.mubr.bf16.mxu0 %v488
        %585 = vmatmul.mubr.bf16.gmra.mxu0 %v379
        %v586 = vpop.f32.mrf.mxu0
        %v587 = vadd.f32 %v277, %v586
        %v588 = vpop.f32.mrf.mxu0
        %v589 = vpop.f32.mrf.mxu0
        %v590 = vadd.f32 %v277, %v589
        %v591 = vpop.f32.mrf.mxu0
        %592 = vmatprep.mubr.bf16.mxu0 %v491
        %593 = vmatmul.mubr.bf16.gmra.mxu0 %v381
        %v594 = vpop.f32.mrf.mxu0
        %v595 = vadd.f32 %v277, %v594
        %v596 = vpop.f32.mrf.mxu0
        %v597 = vpop.f32.mrf.mxu0
        %v598 = vadd.f32 %v277, %v597
        %v599 = vpop.f32.mrf.mxu0
        %600 = vmatprep.mubr.bf16.mxu0 %v494
        %601 = vmatmul.mubr.bf16.gmra.mxu0 %v383
        %v602 = vpop.f32.mrf.mxu0
        %v603 = vadd.f32 %v277, %v602
        %v604 = vpop.f32.mrf.mxu0
        %v605 = vpop.f32.mrf.mxu0
        %v606 = vadd.f32 %v277, %v605
        %v607 = vpop.f32.mrf.mxu0
        %608 = vmatprep.mubr.bf16.mxu0 %v497
        %609 = vmatmul.mubr.bf16.gmra.mxu0 %v385
        %v610 = vpop.f32.mrf.mxu0
        %v611 = vadd.f32 %v277, %v610
        %v612 = vpop.f32.mrf.mxu0
        %v613 = vpop.f32.mrf.mxu0
        %v614 = vadd.f32 %v277, %v613
        %v615 = vpop.f32.mrf.mxu0
        %616 = vmatprep.mubr.bf16.mxu0 %v500
        %617 = vmatmul.mubr.bf16.gmra.mxu0 %v387
        %v618 = vpop.f32.mrf.mxu0
        %v619 = vadd.f32 %v277, %v618
        %v620 = vpop.f32.mrf.mxu0
        %v621 = vpop.f32.mrf.mxu0
        %v622 = vadd.f32 %v277, %v621
        %v623 = vpop.f32.mrf.mxu0
        %624 = vmatprep.mubr.bf16.mxu0 %v503
        %625 = vmatmul.mubr.bf16.gmra.mxu0 %v389
        %v626 = vpop.f32.mrf.mxu0
        %v627 = vadd.f32 %v277, %v626
        %v628 = vpop.f32.mrf.mxu0
        %v629 = vpop.f32.mrf.mxu0
        %v630 = vadd.f32 %v277, %v629
        %v631 = vpop.f32.mrf.mxu0
        %632 = vmatprep.mubr.bf16.mxu0 %v506
        %633 = vmatmul.mubr.bf16.gmra.mxu0 %v391
        %v634 = vpop.f32.mrf.mxu0
        %v635 = vadd.f32 %v277, %v634
        %v636 = vpop.f32.mrf.mxu0
        %v637 = vpop.f32.mrf.mxu0
        %v638 = vadd.f32 %v277, %v637
        %v639 = vpop.f32.mrf.mxu0
        %640 = vmatprep.mubr.bf16.mxu0 %v509
        %641 = vmatmul.mubr.bf16.gmra.mxu0 %v393
        %v642 = vpop.f32.mrf.mxu0
        %v643 = vadd.f32 %v277, %v642
        %v644 = vpop.f32.mrf.mxu0
        %v645 = vpop.f32.mrf.mxu0
        %v646 = vadd.f32 %v277, %v645
        %v647 = vpop.f32.mrf.mxu0
        %648 = vmatprep.mubr.bf16.mxu0 %v512
        %649 = vmatmul.mubr.bf16.gmra.mxu0 %v395
        %v650 = vpop.f32.mrf.mxu0
        %v651 = vadd.f32 %v277, %v650
        %v652 = vpop.f32.mrf.mxu0
        %v653 = vpop.f32.mrf.mxu0
        %v654 = vadd.f32 %v277, %v653
        %v655 = vpop.f32.mrf.mxu0
        %656 = vmatprep.mubr.bf16.mxu0 %v515
        %657 = vmatmul.mubr.bf16.gmra.mxu0 %v397
        %v658 = vpop.f32.mrf.mxu0
        %v659 = vadd.f32 %v277, %v658
        %v660 = vpop.f32.mrf.mxu0
        %v661 = vpop.f32.mrf.mxu0
        %v662 = vadd.f32 %v277, %v661
        %v663 = vpop.f32.mrf.mxu0
        %664 = vmatprep.mubr.bf16.mxu0 %v518
        %665 = vmatmul.mubr.bf16.gmra.mxu0 %v399
        %v666 = vpop.f32.mrf.mxu0
        %v667 = vadd.f32 %v277, %v666
        %v668 = vpop.f32.mrf.mxu0
        %v669 = vpop.f32.mrf.mxu0
        %v670 = vadd.f32 %v277, %v669
        %v671 = vpop.f32.mrf.mxu0
        %672 = vmatprep.mubr.bf16.mxu0 %v521
        %673 = vmatmul.mubr.bf16.gmra.mxu0 %v401
        %v674 = vpop.f32.mrf.mxu0
        %v675 = vadd.f32 %v277, %v674
        %v676 = vpop.f32.mrf.mxu0
        %v677 = vpop.f32.mrf.mxu0
        %v678 = vadd.f32 %v277, %v677
        %v679 = vpop.f32.mrf.mxu0
        %680 = vmatprep.mubr.bf16.mxu0 %v524
        %681 = vmatmul.mubr.bf16.gmra.mxu0 %v403
        %v682 = vpop.f32.mrf.mxu0
        %v683 = vadd.f32 %v277, %v682
        %v684 = vpop.f32.mrf.mxu0
        %v685 = vpop.f32.mrf.mxu0
        %v686 = vadd.f32 %v277, %v685
        %v687 = vpop.f32.mrf.mxu0
        %688 = vmatprep.mubr.bf16.mxu0 %v527
        %689 = vmatmul.mubr.bf16.gmra.mxu0 %v405
        %v690 = vpop.f32.mrf.mxu0
        %v691 = vadd.f32 %v277, %v690
        %v692 = vpop.f32.mrf.mxu0
        %v693 = vpop.f32.mrf.mxu0
        %v694 = vadd.f32 %v277, %v693
        %v695 = vpop.f32.mrf.mxu0
        %696 = vdwg.mxu0
        %v697 = vmax.f32 %v571, 0.0
        %v698 = vmax.f32 %v574, 0.0
        %v699 = vmax.f32 %v579, 0.0
        %v700 = vmax.f32 %v582, 0.0
        %v701 = vmax.f32 %v587, 0.0
        %v702 = vmax.f32 %v590, 0.0
        %v703 = vmax.f32 %v595, 0.0
        %v704 = vmax.f32 %v598, 0.0
        %v705 = vmax.f32 %v603, 0.0
        %v706 = vmax.f32 %v606, 0.0
        %v707 = vmax.f32 %v611, 0.0
        %v708 = vmax.f32 %v614, 0.0
        %v709 = vmax.f32 %v619, 0.0
        %v710 = vmax.f32 %v622, 0.0
        %v711 = vmax.f32 %v627, 0.0
        %v712 = vmax.f32 %v630, 0.0
        %v713 = vmax.f32 %v635, 0.0
        %v714 = vmax.f32 %v638, 0.0
        %v715 = vmax.f32 %v643, 0.0
        %v716 = vmax.f32 %v646, 0.0
        %v717 = vmax.f32 %v651, 0.0
        %v718 = vmax.f32 %v654, 0.0
        %v719 = vmax.f32 %v659, 0.0
        %v720 = vmax.f32 %v662, 0.0
        %v721 = vmax.f32 %v667, 0.0
        %v722 = vmax.f32 %v670, 0.0
        %v723 = vmax.f32 %v675, 0.0
        %v724 = vmax.f32 %v678, 0.0
        %v725 = vmax.f32 %v683, 0.0
        %v726 = vmax.f32 %v686, 0.0
        %v727 = vmax.f32 %v691, 0.0
        %v728 = vmax.f32 %v694, 0.0
        %729 = vst [vmem:[%s204] sm:$0xff] %v697
        %730 = vst [vmem:[%s204 + $0x8] sm:$0xff] %v698
        %731 = vst [vmem:[%s204 + $0x10] sm:$0xff] %v699
        %732 = vst [vmem:[%s204 + $0x18] sm:$0xff] %v700
        %733 = vst [vmem:[%s204 + $0x20] sm:$0xff] %v701
        %734 = vst [vmem:[%s204 + $0x28] sm:$0xff] %v702
        %735 = vst [vmem:[%s204 + $0x30] sm:$0xff] %v703
        %736 = vst [vmem:[%s204 + $0x38] sm:$0xff] %v704
        %737 = vst [vmem:[%s204 + $0x40] sm:$0xff] %v705
        %738 = vst [vmem:[%s204 + $0x48] sm:$0xff] %v706
        %739 = vst [vmem:[%s204 + $0x50] sm:$0xff] %v707
        %740 = vst [vmem:[%s204 + $0x58] sm:$0xff] %v708
        %741 = vst [vmem:[%s204 + $0x60] sm:$0xff] %v709
        %742 = vst [vmem:[%s204 + $0x68] sm:$0xff] %v710
        %743 = vst [vmem:[%s204 + $0x70] sm:$0xff] %v711
        %744 = vst [vmem:[%s204 + $0x78] sm:$0xff] %v712
        %745 = vst [vmem:[%s204 + $0x80] sm:$0xff] %v713
        %746 = vst [vmem:[%s204 + $0x88] sm:$0xff] %v714
        %747 = vst [vmem:[%s204 + $0x90] sm:$0xff] %v715
        %748 = vst [vmem:[%s204 + $0x98] sm:$0xff] %v716
        %749 = vst [vmem:[%s204 + $0xa0] sm:$0xff] %v717
        %750 = vst [vmem:[%s204 + $0xa8] sm:$0xff] %v718
        %751 = vst [vmem:[%s204 + $0xb0] sm:$0xff] %v719
        %752 = vst [vmem:[%s204 + $0xb8] sm:$0xff] %v720
        %753 = vst [vmem:[%s204 + $0xc0] sm:$0xff] %v721
        %754 = vst [vmem:[%s204 + $0xc8] sm:$0xff] %v722
        %755 = vst [vmem:[%s204 + $0xd0] sm:$0xff] %v723
        %756 = vst [vmem:[%s204 + $0xd8] sm:$0xff] %v724
        %757 = vst [vmem:[%s204 + $0xe0] sm:$0xff] %v725
        %758 = vst [vmem:[%s204 + $0xe8] sm:$0xff] %v726
        %759 = vst [vmem:[%s204 + $0xf0] sm:$0xff] %v727
        %760 = vst [vmem:[%s204 + $0xf8] sm:$0xff] %v728
        %s761 = sand.u32 %s117, 1
        %s762 = scalar_lea.sflag [#allocation3], %s761
        %s763 = sand.u32 %s117, 1
        %s764 = smul.addr %s763, 256
        %s765 = scalar_lea.vmem [#allocation2], %s764
        // Predicated region
        $region33: #{tpu_custom_call.1} parent=31 // pred_check
          %p766 = pneg %p127
        $region34: #{tpu_custom_call.1} parent=31 // pred_check_branch
          %768 = sbr.rel (%p766) target = $region36
        $region35: #{tpu_custom_call.1} parent=31 // pred_region
          %s769 = smul.u32 32, %s21
          %s771 = ssub.s32 4096, 4096
          %772 = vsyncadd %s762, %s771
          %s773 = sadd.s32 %s22, %s769
          %s774 = smul.addr %s773, 128
          %s775 = scalar_lea.hbm %s3, %s774
          %s776 = sshll.u32 %s765, 4
          %s777 = int_to_ptr.vmem [resolvable:$true] %s776
          %782 = dma.vmem_to_hbm [thread:$0]  %s777, 4096, %s775, %s762, 128, 128, 8
        $region36: #{tpu_custom_call.1} parent=31 // pred_fallthru
          _
      $region32: #{tpu_custom_call.1} parent=5 // pred_fallthru
        _
      %p783 = scmp.le.s32.totalorder 2, %s12
      // Predicated region
      $region37: #{tpu_custom_call.1} parent=5 // pred_check
        %p784 = pneg %p783
      $region38: #{tpu_custom_call.1} parent=5 // pred_check_branch
        %786 = sbr.rel (%p784) target = $region40
      $region39: #{tpu_custom_call.1} parent=5 // pred_region
        %s787 = ssub.s32 %s12, 2
        // Predicated region
        $region41: #{tpu_custom_call.1} parent=39 // pred_check
          %p788 = pneg %p133
        $region42: #{tpu_custom_call.1} parent=39 // pred_check_branch
          %790 = sbr.rel (%p788) target = $region44
        $region43: #{tpu_custom_call.1} parent=39 // pred_region
          %s791 = sand.u32 %s118, 1
          %s792 = scalar_lea.sflag [#allocation3], %s791
          %s793 = sand.u32 %s118, 1
          %s794 = smul.addr %s793, 256
          %s795 = scalar_lea.vmem [#allocation2], %s794
          %796 = dma.done %s792, 4096
        $region44: #{tpu_custom_call.1} parent=39 // pred_fallthru
          _
      $region40: #{tpu_custom_call.1} parent=5 // pred_fallthru
        _
    $region6: #{tpu_custom_call.1} parent=1 // loop_footer
      %s16 = sadd.s32 1, %s12
    $region7: #{tpu_custom_call.1} parent=1 // loop_footer_branch
      %11 = sbr.rel target = $region3
    $region8: #{tpu_custom_call.1} parent=1 // loop_exit
      _
    %797 = vsyncpa [#allocation3], 1
    %s798 = scalar_lea.sflag [#allocation3], 1
    %799 = vsyncpa %s798, 1

</llo_original>
